<compile_context>
chip_gen: v7x
topology: tpu7x:2x2x1
jax: 0.10.0
libtpu: 0.0.40
codegen_flags: <defaults>
</compile_context>

<pallas_src>
import functools

import jax
import jax.numpy as jnp
from jax import lax
from jax.experimental import pallas as pl
from jax.experimental.pallas import tpu as pltpu


def _ls_ce_kernel(x_ref, t_ref, out_ref, *, smoothing, n_valid, tile_n):
    """One grid step processes a (tile_n, C) block of logits.

    x_ref  : (tile_n, C)    logits (any float dtype; cast to f32 in-register)
    t_ref  : (tile_n, 1)    int32 class indices
    out_ref: (1, 8, 128)    f32   this tile's partial loss sum (broadcast)
    """
    x = x_ref[...].astype(jnp.float32)                                  # (tn, C)

    # Numerically stable pieces of log-softmax; logprobs itself is never built.
    m = jnp.max(x, axis=-1, keepdims=True)                              # (tn, 1)
    shifted = x - m                                                     # (tn, C)
    lse = jnp.log(jnp.sum(jnp.exp(shifted), axis=-1, keepdims=True))    # (tn, 1)

    # shifted[row, target[row]] via a one-hot lane mask (no cross-lane gather).
    tgt = t_ref[...]                                                    # (tn, 1)
    cols = lax.broadcasted_iota(jnp.int32, shifted.shape, 1)
    s_tgt = jnp.sum(jnp.where(cols == tgt, shifted, 0.0),
                    axis=-1, keepdims=True)                             # (tn, 1)
    mean_shift = jnp.mean(shifted, axis=-1, keepdims=True)              # (tn, 1)

    # nll = lse - s_tgt ; smooth = lse - mean_shift ; conf + smoothing == 1
    confidence = 1.0 - smoothing
    per_row = lse - confidence * s_tgt - smoothing * mean_shift         # (tn, 1)

    # Mask padded batch rows (global row index >= n_valid contributes 0).
    row = (pl.program_id(0) * tile_n
           + lax.broadcasted_iota(jnp.int32, (tile_n, 1), 0))
    per_row = jnp.where(row < n_valid, per_row, 0.0)

    partial = jnp.sum(per_row)                                          # scalar f32
    out_ref[...] = jnp.full((1, 8, 128), partial, dtype=jnp.float32)


def _choose_tile_n(n, c, itemsize):
    """~2 MiB per (tile_n, C) logits block, multiple of 8 rows, and (when the
    batch allows it) at least 8 grid steps for pipelining / megacore sharding."""
    n_pad8 = ((n + 7) // 8) * 8
    row_bytes = max(1, c * itemsize)
    tile = (2 * 1024 * 1024) // row_bytes
    tile = max(8, min(n_pad8, (tile // 8) * 8))
    while tile > 8 and -(-n_pad8 // tile) < 8:
        tile = max(8, ((tile // 2) // 8) * 8)
    return tile


def label_smoothing_cross_entropy(x, target, *, smoothing=0.1, tile_n=None):
    """x: (N, C) logits (f32 or bf16), target: (N,) int class indices.

    Returns the scalar f32 label-smoothed cross-entropy loss.
    """
    assert smoothing < 1.0
    N, C = x.shape
    itemsize = jnp.dtype(x.dtype).itemsize
    if tile_n is None:
        tile_n = _choose_tile_n(N, C, itemsize)
    assert tile_n % 8 == 0, "tile_n must be a multiple of 8"

    # Pad the batch to a multiple of tile_n; padded rows are masked in-kernel.
    num_tiles = pl.cdiv(N, tile_n)
    n_pad = num_tiles * tile_n
    if n_pad != N:
        x = jnp.pad(x, ((0, n_pad - N), (0, 0)))
        target = jnp.pad(target, (0, n_pad - N))
    tgt2d = target.astype(jnp.int32).reshape(n_pad, 1)

    kernel = functools.partial(
        _ls_ce_kernel,
        smoothing=float(smoothing),
        n_valid=N,
        tile_n=tile_n,
    )

    partials = pl.pallas_call(
        kernel,
        out_shape=jax.ShapeDtypeStruct((num_tiles, 8, 128), jnp.float32),
        grid_spec=pltpu.PrefetchScalarGridSpec(
            num_scalar_prefetch=0,
            grid=(num_tiles,),
            in_specs=[
                pl.BlockSpec((tile_n, C), lambda i: (i, 0)),
                pl.BlockSpec((tile_n, 1), lambda i: (i, 0)),
            ],
            # Lane-dense, per-tile output block: no carried state across the
            # grid, so the axis can be "parallel" (v7x megacore sharding).
            out_specs=pl.BlockSpec((1, 8, 128), lambda i: (i, 0, 0)),
        ),
        compiler_params=pltpu.CompilerParams(
            dimension_semantics=("parallel",),
        ),
    )(x, tgt2d)

    # Final reduction over tiles + mean over the *valid* batch, in plain JAX.
    return jnp.sum(partials[:, 0, 0]) / jnp.float32(N)


def _reference(x, target, smoothing=0.1):
    confidence = 1.0 - smoothing
    logprobs = jax.nn.log_softmax(x.astype(jnp.float32), axis=-1)
    nll = -jnp.take_along_axis(logprobs, target[:, None], axis=-1)[:, 0]
    smooth = -jnp.mean(logprobs, axis=-1)
    return jnp.mean(confidence * nll + smoothing * smooth)


if __name__ == "__main__":
    key = jax.random.PRNGKey(0)
    kx, kt = jax.random.split(key)

    # Small shapes consistent with the module: (batch, num_classes) logits.
    N, C = 8, 32
    x = jax.random.normal(kx, (N, C), dtype=jnp.float32)
    target = jax.random.randint(kt, (N,), 0, C, dtype=jnp.int32)

    loss = jax.block_until_ready(
        label_smoothing_cross_entropy(x, target, smoothing=0.1))
    ref = _reference(x, target, smoothing=0.1)
    assert jnp.allclose(loss, ref, atol=1e-5, rtol=1e-5), (loss, ref)

    # Multi-tile + padded-batch path (N not a multiple of tile_n, grid > 1).
    N2, C2 = 50, 128
    x2 = jax.random.normal(kx, (N2, C2), dtype=jnp.float32)
    t2 = jax.random.randint(kt, (N2,), 0, C2, dtype=jnp.int32)
    loss2 = jax.block_until_ready(
        label_smoothing_cross_entropy(x2, t2, smoothing=0.1, tile_n=16))
    ref2 = _reference(x2, t2, smoothing=0.1)
    assert jnp.allclose(loss2, ref2, atol=1e-5, rtol=1e-5), (loss2, ref2)

    # bf16 logits path: HBM/VMEM block stays bf16, compute is f32 in-register.
    x3 = x2.astype(jnp.bfloat16)
    loss3 = jax.block_until_ready(
        label_smoothing_cross_entropy(x3, t2, smoothing=0.1, tile_n=16))
    ref3 = _reference(x3.astype(jnp.float32), t2, smoothing=0.1)
    assert jnp.allclose(loss3, ref3, atol=2e-2, rtol=2e-2), (loss3, ref3)

    print("KERNEL_OK")
</pallas_src>

<mosaic_0001>
module attributes {stable_mosaic.version = 11 : i64} {
  func.func @_ls_ce_kernel(%arg0: i32, %arg1: memref<8x32xf32, #tpu.memory_space<vmem>>, %arg2: memref<8x1xi32, #tpu.memory_space<vmem>>, %arg3: memref<1x8x128xf32, #tpu.memory_space<vmem>>) attributes {dimension_semantics = [#tpu.dimension_semantics<parallel>], iteration_bounds = array<i64: 1>, scalar_prefetch = 0 : i64, scratch_operands = 0 : i64, tpu.core_type = #tpu.core_type<tc>, window_params = [{transform_indices = @transform_0, window_bounds = array<i64: 8, 32>}, {transform_indices = @transform_1, window_bounds = array<i64: 8, 1>}, {transform_indices = @transform_2, window_bounds = array<i64: 1, 8, 128>}]} {
    %c0 = arith.constant 0 : index
    %c0_0 = arith.constant 0 : index
    %0 = vector.load %arg1[%c0, %c0_0] : memref<8x32xf32, #tpu.memory_space<vmem>>, vector<8x32xf32>
    %cst = arith.constant dense<0xFF800000> : vector<8xf32>
    %1 = vector.multi_reduction <maximumf>, %0, %cst [1] : vector<8x32xf32> to vector<8xf32>
    %2 = vector.shape_cast %1 : vector<8xf32> to vector<8x1xf32>
    %3 = vector.broadcast %2 : vector<8x1xf32> to vector<8x32xf32>
    %4 = arith.subf %0, %3 : vector<8x32xf32>
    %5 = math.exp %4 : vector<8x32xf32>
    %cst_1 = arith.constant dense<0.000000e+00> : vector<8xf32>
    %6 = vector.multi_reduction <add>, %5, %cst_1 [1] : vector<8x32xf32> to vector<8xf32>
    %7 = vector.shape_cast %6 : vector<8xf32> to vector<8x1xf32>
    %8 = math.log %7 : vector<8x1xf32>
    %c0_2 = arith.constant 0 : index
    %c0_3 = arith.constant 0 : index
    %9 = vector.load %arg2[%c0_2, %c0_3] : memref<8x1xi32, #tpu.memory_space<vmem>>, vector<8x1xi32>
    %10 = tpu.iota {dimensions = array<i32: 1>} : vector<8x32xi32>
    %11 = vector.broadcast %9 : vector<8x1xi32> to vector<8x32xi32>
    %12 = arith.cmpi eq, %10, %11 : vector<8x32xi32>
    %cst_4 = arith.constant 0.000000e+00 : f32
    %13 = vector.broadcast %cst_4 : f32 to vector<8x32xf32>
    %14 = arith.select %12, %4, %13 : vector<8x32xi1>, vector<8x32xf32>
    %cst_5 = arith.constant dense<0.000000e+00> : vector<8xf32>
    %15 = vector.multi_reduction <add>, %14, %cst_5 [1] : vector<8x32xf32> to vector<8xf32>
    %16 = vector.shape_cast %15 : vector<8xf32> to vector<8x1xf32>
    %cst_6 = arith.constant dense<0.000000e+00> : vector<8xf32>
    %17 = vector.multi_reduction <add>, %4, %cst_6 [1] : vector<8x32xf32> to vector<8xf32>
    %18 = vector.shape_cast %17 : vector<8xf32> to vector<8x1xf32>
    %cst_7 = arith.constant 3.200000e+01 : f32
    %19 = vector.broadcast %cst_7 : f32 to vector<8x1xf32>
    %20 = arith.divf %18, %19 : vector<8x1xf32>
    %cst_8 = arith.constant 0.899999976 : f32
    %21 = vector.broadcast %cst_8 : f32 to vector<8x1xf32>
    %22 = arith.mulf %21, %16 : vector<8x1xf32>
    %23 = arith.subf %8, %22 : vector<8x1xf32>
    %cst_9 = arith.constant 1.000000e-01 : f32
    %24 = vector.broadcast %cst_9 : f32 to vector<8x1xf32>
    %25 = arith.mulf %24, %20 : vector<8x1xf32>
    %26 = arith.subf %23, %25 : vector<8x1xf32>
    %c8_i32 = arith.constant 8 : i32
    %27 = arith.muli %arg0, %c8_i32 : i32
    %28 = tpu.iota {dimensions = array<i32: 0>} : vector<8x1xi32>
    %29 = vector.broadcast %27 : i32 to vector<8x1xi32>
    %30 = arith.addi %29, %28 : vector<8x1xi32>
    %c8_i32_10 = arith.constant 8 : i32
    %31 = vector.broadcast %c8_i32_10 : i32 to vector<8x1xi32>
    %32 = arith.cmpi slt, %30, %31 : vector<8x1xi32>
    %cst_11 = arith.constant 0.000000e+00 : f32
    %33 = vector.broadcast %cst_11 : f32 to vector<8x1xf32>
    %34 = arith.select %32, %26, %33 : vector<8x1xi1>, vector<8x1xf32>
    %35 = vector.shape_cast %34 : vector<8x1xf32> to vector<1x8x1xf32>
    %cst_12 = arith.constant dense<0.000000e+00> : vector<1xf32>
    %36 = vector.multi_reduction <add>, %35, %cst_12 [1, 2] : vector<1x8x1xf32> to vector<1xf32>
    %37 = vector.shape_cast %36 : vector<1xf32> to vector<1x1x1xf32>
    %38 = vector.extract %37[0, 0, 0] : f32 from vector<1x1x1xf32>
    %39 = vector.broadcast %38 : f32 to vector<1x8x128xf32>
    %c0_13 = arith.constant 0 : index
    %c0_14 = arith.constant 0 : index
    %c0_15 = arith.constant 0 : index
    %40 = vector.load %arg3[%c0_13, %c0_14, %c0_15] : memref<1x8x128xf32, #tpu.memory_space<vmem>>, vector<1x8x128xf32>
    tpu.vector_store %arg3[%c0_13, %c0_14, %c0_15], %39 {strides = array<i32>} : memref<1x8x128xf32, #tpu.memory_space<vmem>>, vector<1x8x128xf32>,
    return
  }
  func.func @transform_0(%arg0: i32) -> (i32, i32) {
    %c0_i32 = arith.constant 0 : i32
    %c0_i32_0 = arith.constant 0 : i32
    return %arg0, %c0_i32 : i32, i32
  }
  func.func @transform_1(%arg0: i32) -> (i32, i32) {
    %c0_i32 = arith.constant 0 : i32
    %c0_i32_0 = arith.constant 0 : i32
    return %arg0, %c0_i32 : i32, i32
  }
  func.func @transform_2(%arg0: i32) -> (i32, i32, i32) {
    %c0_i32 = arith.constant 0 : i32
    %c0_i32_0 = arith.constant 0 : i32
    %c0_i32_1 = arith.constant 0 : i32
    return %arg0, %c0_i32, %c0_i32_0 : i32, i32, i32
  }
}

</mosaic_0001>

<llo_original>
// kernel: tpu_custom_call.1
$region0: #{tpu_custom_call.1}
  #allocation0 [shape = 'u32[]', space=smem, size = 0x4, offset = 0x4, fixed_abs, tag = 'smem constant byte address 0x4 - core index']
  #allocation1 [shape = 'u32[144,128]{1,0:T(1,128)}', space=vmem, size = 0x12000, scoped, tag = 'internal scratch']
  %s0 = inlined_call_operand.vmem [shape: f32[8,32], index: 0, kind: input, shape index: {}]
  %s1 = inlined_call_operand.vmem [shape: s32[8,1], index: 1, kind: input, shape index: {}]
  %s2 = inlined_call_operand.hbm [shape: f32[1,8,128], index: 2, kind: output, shape index: {}]
  %s3 = sld [smem:[#allocation0]]
  $region18: #{tpu_custom_call.1} parent=0
    _
  %s5 = ssub.s32 1, %s3
  %s6 = scalar_select 0, %s5, %s3
  $region1: #{tpu_custom_call.1} parent=0
    #allocation2 [shape = 'u8[4096]{0}', space=vmem, size = 0x1000, scoped, tag = 'output window, operand 0, single buffered']
    #allocation3 [shape = 's32[1]{0}', space=sflag, size = 0x4, scoped, tag = 'scoped memory for tpu_custom_call.1']
    %7 = vsyncpa [#allocation3], 0
    // Predicated region
    $region2: #{tpu_custom_call.1} parent=1 // pred_check
      _
    $region3: #{tpu_custom_call.1} parent=1 // pred_check_branch
      %9 = sbr.rel (0) target = $region5
    $region4: #{tpu_custom_call.1} parent=1 // pred_region
      _
    $region5: #{tpu_custom_call.1} parent=1 // pred_fallthru
      _
    // Predicated region
    $region6: #{tpu_custom_call.1} parent=1 // pred_check
      _
    $region7: #{tpu_custom_call.1} parent=1 // pred_check_branch
      %11 = sbr.rel (0) target = $region9
    $region8: #{tpu_custom_call.1} parent=1 // pred_region
      _
    $region9: #{tpu_custom_call.1} parent=1 // pred_fallthru
      _
    %v12 = vld [vmem:[%s0] sm:$0xff]
    %vm13 = vcmask 261120
    %v14 = vsel %vm13, %v12, -inf
    %15 = vmax.xlane.f32.xlu0 %v14
    %v16 = vpop.xlane.xlu0 %15
    %v17 = vsub.f32 %v12, %v16
    %v18 = vmul.f32 %v17, 1.442695
    %v19 = vpow.pop %v18
    %v20 = vsel %vm13, %v19, 0.0
    %21 = vadd.xlane.f32.xlu0 %v20
    %v22 = vpop.xlane.xlu0 %21
    %v23 = vlog2.pop %v22
    %v24 = vmul.f32 %v23, 0.6931472
    %v25 = vld [vmem:[%s1] sm:$0xff]
    %v26 = vlaneseq
    %v27 = vand.u32 %v26, 127
    %28 = vset.pattern.permute.xlu0 0
    %29 = vperm.xlu0 %28, %v25
    %v30 = vpop.permute.xlu0 %29
    %vm31 = vcmp.eq.s32.totalorder %v27, %v30
    %v32 = vsel %vm31, %v17, 0.0
    %v33 = vsel %vm13, %v32, 0.0
    %34 = vadd.xlane.f32.xlu0 %v33
    %v35 = vpop.xlane.xlu0 %34
    %v36 = vsel %vm13, %v17, 0.0
    %37 = vadd.xlane.f32.xlu0 %v36
    %v38 = vpop.xlane.xlu0 %37
    %v39 = vrcp.pop 32.0
    %v40 = vmul.f32 %v38, %v39
    %v41 = vmul.f32 %v35, 0.9
    %v42 = vsub.f32 %v24, %v41
    %v43 = vmul.f32 %v40, 0.1
    %v44 = vsub.f32 %v42, %v43
    %s45 = smul.u32 0, 8
    %v46 = vlaneseq
    %v47 = vshrl.u32 %v46, 7
    %v48 = vstv %s45
    %v49 = vadd.s32 %v48, %v47
    %vm50 = vcmp.lt.s32.totalorder %v49, 8
    %v51 = vsel %vm50, %v44, 0.0
    %vm52 = vcmask 7168
    %v53 = vsel %vm52, %v51, 0.0
    %54 = vadd.xlane.f32.xlu0 %v53
    %v55 = vpop.xlane.xlu0 %54
    %v56 = vrot.slane %v55, 4
    %v57 = vadd.f32 %v55, %v56
    %v58 = vrot.slane %v57, 2
    %v59 = vadd.f32 %v57, %v58
    %v60 = vrot.slane %v59, 1
    %v61 = vadd.f32 %v59, %v60
    %s62 = vtos %v61
    %v63 = vstv %s62
    %64 = vst [vmem:[#allocation2] sm:$0xff] %v63
    // Predicated region
    $region10: #{tpu_custom_call.1} parent=1 // pred_check
      _
    $region11: #{tpu_custom_call.1} parent=1 // pred_check_branch
      %66 = sbr.rel (0) target = $region13
    $region12: #{tpu_custom_call.1} parent=1 // pred_region
      %s68 = ssub.s32 128, 128
      %69 = vsyncadd [#allocation3], %s68
      %s71 = sshll.u32 [#allocation2], 4
      %s72 = int_to_ptr.vmem [resolvable:$true] %s71
      %74 = dma.vmem_to_hbm [thread:$0]  %s72, 128, %s2, [#allocation3]
    $region13: #{tpu_custom_call.1} parent=1 // pred_fallthru
      _
    // Predicated region
    $region14: #{tpu_custom_call.1} parent=1 // pred_check
      _
    $region15: #{tpu_custom_call.1} parent=1 // pred_check_branch
      %76 = sbr.rel (0) target = $region17
    $region16: #{tpu_custom_call.1} parent=1 // pred_region
      %77 = dma.done [#allocation3], 128
    $region17: #{tpu_custom_call.1} parent=1 // pred_fallthru
      _
    %78 = vsyncpa [#allocation3], 1

</llo_original>
